<compile_context>
chip_gen: v7x
topology: tpu7x:2x2x1
jax: 0.10.0
libtpu: 0.0.40
codegen_flags: <defaults>
</compile_context>

<pallas_src>
import functools

import jax
import jax.numpy as jnp
from jax.experimental import pallas as pl
from jax.experimental.pallas import tpu as pltpu


def _focal_loss_kernel(logits_ref, side_ref, out_ref, *, gamma):
    x = logits_ref[...].astype(jnp.float32)      # (TB, C) logits, f32 compute
    side = side_ref[...]                         # (TB, 2) f32: [target, alpha_t]
    t = side[:, 0:1].astype(jnp.int32)           # (TB, 1) labels (exact for C < 2^24)
    a_t = side[:, 1:2]                           # (TB, 1) alpha[target]

    tb, c = x.shape
    class_ids = jax.lax.broadcasted_iota(jnp.int32, (tb, c), 1)

    # numerically stable log-sum-exp cross entropy (padded lanes masked by Mosaic)
    m = jnp.max(x, axis=-1, keepdims=True)                               # (TB, 1)
    lse = m + jnp.log(jnp.sum(jnp.exp(x - m), axis=-1, keepdims=True))   # (TB, 1)
    x_t = jnp.sum(jnp.where(class_ids == t, x, 0.0),
                  axis=-1, keepdims=True)                                # (TB, 1)
    ce = jnp.maximum(lse - x_t, 0.0)                                     # (TB, 1)

    pt = jnp.exp(-ce)
    one_minus_pt = 1.0 - pt

    g = float(gamma)
    if g == 0.0:
        mod = jnp.ones_like(one_minus_pt)
    elif g.is_integer() and 0.0 < g <= 8.0:
        # repeated multiply on the VPU (no EUP pow) for the common gamma=2
        mod = one_minus_pt
        for _ in range(int(g) - 1):
            mod = mod * one_minus_pt
    else:
        mod = jnp.power(jnp.maximum(one_minus_pt, 0.0), g)

    out_ref[...] = mod * ce * a_t                                        # (TB, 1)


def _round_up(v, m):
    return ((v + m - 1) // m) * m


def focal_loss(logits, targets, alpha=None, gamma=2.0, reduction="mean",
               tile_b=None):
    """logits: (B, C) float (f32/bf16), targets: (B,) int, alpha: None | (C,) | dict."""
    b, c = logits.shape
    itemsize = jnp.dtype(logits.dtype).itemsize
    targets = targets.astype(jnp.int32)

    # alpha gather is a trivial (B,) XLA gather done outside the kernel.
    if isinstance(alpha, dict):
        alpha = jnp.asarray([float(alpha.get(i, 1.0)) for i in range(c)],
                            dtype=jnp.float32)
    if alpha is None:
        alpha_t = jnp.ones((b,), dtype=jnp.float32)
    else:
        alpha_t = jnp.asarray(alpha, dtype=jnp.float32)[targets]

    # One merged (B, 2) f32 side array: [targets-as-float, alpha[target]]
    # (single small per-step DMA instead of two).
    side = jnp.stack([targets.astype(jnp.float32), alpha_t], axis=-1)

    # --- generation-aware VMEM / tile budgeting -----------------------------
    try:
        vmem_cap = int(pltpu.get_tpu_info().vmem_capacity_bytes)
    except Exception:
        vmem_cap = 64 * 1024 * 1024        # conservative (v7x per-TC)

    if vmem_cap <= 64 * 1024 * 1024:
        f32_tile_budget = 4 * 1024 * 1024   # v7x: leave room for f32 temps in 64 MiB
    else:
        f32_tile_budget = 8 * 1024 * 1024   # v5e / v6e: 128 MiB physical

    # Batch tile: multiple of 8 sublanes, sized so the f32 working copy of one
    # logits tile is ~f32_tile_budget, capped so there are >= ~4 grid steps
    # when the batch allows (v7x 2-TC split + pipelining), never larger than
    # the (rounded-up) batch.
    row_f32_bytes = max(c, 1) * 4
    tile_cap = max(8, (f32_tile_budget // row_f32_bytes) // 8 * 8)
    multi_step_cap = max(8, _round_up(pl.cdiv(b, 4), 8))
    if tile_b is None:
        tile_b = min(tile_cap, multi_step_cap, _round_up(b, 8))
    else:
        tile_b = min(_round_up(max(tile_b, 8), 8), tile_cap, _round_up(b, 8))
    tile_b = max(8, tile_b)

    num_tiles = pl.cdiv(b, tile_b)

    # Scoped-VMEM limit with headroom below physical capacity.
    vmem_limit = max(32 * 1024 * 1024, (vmem_cap * 3) // 4)

    grid = (num_tiles,)
    kernel = functools.partial(_focal_loss_kernel, gamma=float(gamma))

    per_sample = pl.pallas_call(
        kernel,
        out_shape=jax.ShapeDtypeStruct((b, 1), jnp.float32),
        grid=grid,
        in_specs=[
            pl.BlockSpec((tile_b, c), lambda i: (i, 0)),   # logits tile (full C)
            pl.BlockSpec((tile_b, 2), lambda i: (i, 0)),   # [target, alpha] columns
        ],
        out_specs=pl.BlockSpec((tile_b, 1), lambda i: (i, 0)),
        compiler_params=pltpu.CompilerParams(
            dimension_semantics=("parallel",),     # v7x: shard grid over 2 TCs
            vmem_limit_bytes=int(vmem_limit),
        ),
        cost_estimate=pl.CostEstimate(
            flops=6 * b * c,
            transcendentals=b * c + 2 * b,          # exp(x - m) pass dominates
            bytes_accessed=b * c * itemsize + b * (2 * 4) + b * 4,
        ),
    )(logits, side)

    fl = per_sample[:, 0]
    if reduction == "mean":
        return jnp.mean(fl)
    elif reduction == "sum":
        return jnp.sum(fl)
    else:                             # 'none' → per-sample focal values
        return fl


def _focal_loss_ref(logits, targets, alpha, gamma, reduction="mean"):
    # pure-JAX reference for validation
    logp = jax.nn.log_softmax(logits.astype(jnp.float32), axis=-1)
    ce = -jnp.take_along_axis(logp, targets[:, None], axis=-1)[:, 0]
    pt = jnp.exp(-ce)
    fl = (1.0 - pt) ** gamma * ce
    if alpha is not None:
        fl = fl * jnp.asarray(alpha, dtype=jnp.float32)[targets]
    if reduction == "mean":
        return jnp.mean(fl)
    elif reduction == "sum":
        return jnp.sum(fl)
    return fl


if __name__ == "__main__":
    key = jax.random.PRNGKey(0)
    k1, k2, k3, k4 = jax.random.split(key, 4)

    B, C = 64, 10
    logits = jax.random.normal(k1, (B, C), dtype=jnp.float32)
    targets = jax.random.randint(k2, (B,), 0, C, dtype=jnp.int32)
    # deterministic synthetic class weights (stand-in for inverse class freq.)
    alpha = jnp.linspace(0.5, 1.5, C, dtype=jnp.float32)
    gamma = 2.0

    # 'mean' reduction (the default of the PyTorch module)
    loss = jax.block_until_ready(
        focal_loss(logits, targets, alpha=alpha, gamma=gamma, reduction="mean"))
    ref = _focal_loss_ref(logits, targets, alpha, gamma, reduction="mean")
    assert jnp.allclose(loss, ref, rtol=1e-5, atol=1e-5), (loss, ref)

    # 'sum' reduction
    loss_s = jax.block_until_ready(
        focal_loss(logits, targets, alpha=alpha, gamma=gamma, reduction="sum"))
    ref_s = _focal_loss_ref(logits, targets, alpha, gamma, reduction="sum")
    assert jnp.allclose(loss_s, ref_s, rtol=1e-5, atol=1e-5), (loss_s, ref_s)

    # 'none' reduction (per-sample)
    loss_n = jax.block_until_ready(
        focal_loss(logits, targets, alpha=alpha, gamma=gamma, reduction="none"))
    ref_n = _focal_loss_ref(logits, targets, alpha, gamma, reduction="none")
    assert loss_n.shape == (B,)
    assert jnp.allclose(loss_n, ref_n, rtol=1e-5, atol=1e-5)

    # no-alpha path + ragged batch (B not a multiple of the tile / of 8)
    Br = 37
    logits_r = jax.random.normal(k3, (Br, C), dtype=jnp.float32)
    targets_r = jax.random.randint(k4, (Br,), 0, C, dtype=jnp.int32)
    loss_r = jax.block_until_ready(
        focal_loss(logits_r, targets_r, alpha=None, gamma=gamma, reduction="mean"))
    ref_r = _focal_loss_ref(logits_r, targets_r, None, gamma, reduction="mean")
    assert jnp.allclose(loss_r, ref_r, rtol=1e-5, atol=1e-5), (loss_r, ref_r)

    # bf16 logits path (kernel upcasts to f32 internally)
    logits_bf = logits.astype(jnp.bfloat16)
    loss_bf = jax.block_until_ready(
        focal_loss(logits_bf, targets, alpha=alpha, gamma=gamma, reduction="mean"))
    ref_bf = _focal_loss_ref(logits_bf, targets, alpha, gamma, reduction="mean")
    assert jnp.allclose(loss_bf, ref_bf, rtol=1e-4, atol=1e-4), (loss_bf, ref_bf)

    print("KERNEL_OK")
</pallas_src>

<mosaic_0001>
module attributes {stable_mosaic.version = 11 : i64} {
  func.func @_focal_loss_kernel(%arg0: i32, %arg1: memref<16x10xf32, #tpu.memory_space<vmem>>, %arg2: memref<16x2xf32, #tpu.memory_space<vmem>>, %arg3: memref<16x1xf32, #tpu.memory_space<vmem>>) attributes {dimension_semantics = [#tpu.dimension_semantics<parallel>], iteration_bounds = array<i64: 4>, scalar_prefetch = 0 : i64, scratch_operands = 0 : i64, tpu.core_type = #tpu.core_type<tc>, window_params = [{transform_indices = @transform_0, window_bounds = array<i64: 16, 10>}, {transform_indices = @transform_1, window_bounds = array<i64: 16, 2>}, {transform_indices = @transform_2, window_bounds = array<i64: 16, 1>}]} {
    %c0 = arith.constant 0 : index
    %c0_0 = arith.constant 0 : index
    %0 = vector.load %arg1[%c0, %c0_0] : memref<16x10xf32, #tpu.memory_space<vmem>>, vector<16x10xf32>
    %c0_1 = arith.constant 0 : index
    %c0_2 = arith.constant 0 : index
    %1 = vector.load %arg2[%c0_1, %c0_2] : memref<16x2xf32, #tpu.memory_space<vmem>>, vector<16x2xf32>
    %2 = vector.extract_strided_slice %1 {offsets = [0, 0], sizes = [16, 1], strides = [1, 1]} : vector<16x2xf32> to vector<16x1xf32>
    %3 = arith.fptosi %2 : vector<16x1xf32> to vector<16x1xi32>
    %4 = vector.extract_strided_slice %1 {offsets = [0, 1], sizes = [16, 1], strides = [1, 1]} : vector<16x2xf32> to vector<16x1xf32>
    %5 = tpu.iota {dimensions = array<i32: 1>} : vector<16x10xi32>
    %cst = arith.constant dense<0xFF800000> : vector<16xf32>
    %6 = vector.multi_reduction <maximumf>, %0, %cst [1] : vector<16x10xf32> to vector<16xf32>
    %7 = vector.shape_cast %6 : vector<16xf32> to vector<16x1xf32>
    %8 = vector.broadcast %7 : vector<16x1xf32> to vector<16x10xf32>
    %9 = arith.subf %0, %8 : vector<16x10xf32>
    %10 = math.exp %9 : vector<16x10xf32>
    %cst_3 = arith.constant dense<0.000000e+00> : vector<16xf32>
    %11 = vector.multi_reduction <add>, %10, %cst_3 [1] : vector<16x10xf32> to vector<16xf32>
    %12 = vector.shape_cast %11 : vector<16xf32> to vector<16x1xf32>
    %13 = math.log %12 : vector<16x1xf32>
    %14 = arith.addf %7, %13 : vector<16x1xf32>
    %15 = vector.broadcast %3 : vector<16x1xi32> to vector<16x10xi32>
    %16 = arith.cmpi eq, %5, %15 : vector<16x10xi32>
    %cst_4 = arith.constant 0.000000e+00 : f32
    %17 = vector.broadcast %cst_4 : f32 to vector<16x10xf32>
    %18 = arith.select %16, %0, %17 : vector<16x10xi1>, vector<16x10xf32>
    %cst_5 = arith.constant dense<0.000000e+00> : vector<16xf32>
    %19 = vector.multi_reduction <add>, %18, %cst_5 [1] : vector<16x10xf32> to vector<16xf32>
    %20 = vector.shape_cast %19 : vector<16xf32> to vector<16x1xf32>
    %21 = arith.subf %14, %20 : vector<16x1xf32>
    %cst_6 = arith.constant 0.000000e+00 : f32
    %22 = vector.broadcast %cst_6 : f32 to vector<16x1xf32>
    %23 = arith.maximumf %21, %22 : vector<16x1xf32>
    %cst_7 = arith.constant 0.000000e+00 : f32
    %24 = vector.broadcast %cst_7 : f32 to vector<16x1xf32>
    %25 = arith.subf %24, %23 : vector<16x1xf32>
    %26 = math.exp %25 : vector<16x1xf32>
    %cst_8 = arith.constant 1.000000e+00 : f32
    %27 = vector.broadcast %cst_8 : f32 to vector<16x1xf32>
    %28 = arith.subf %27, %26 : vector<16x1xf32>
    %29 = arith.mulf %28, %28 : vector<16x1xf32>
    %30 = arith.mulf %29, %23 : vector<16x1xf32>
    %31 = arith.mulf %30, %4 : vector<16x1xf32>
    %c0_9 = arith.constant 0 : index
    %c0_10 = arith.constant 0 : index
    %32 = vector.load %arg3[%c0_9, %c0_10] : memref<16x1xf32, #tpu.memory_space<vmem>>, vector<16x1xf32>
    tpu.vector_store %arg3[%c0_9, %c0_10], %31 {strides = array<i32>} : memref<16x1xf32, #tpu.memory_space<vmem>>, vector<16x1xf32>,
    return
  }
  func.func @transform_0(%arg0: i32) -> (i32, i32) {
    %c0_i32 = arith.constant 0 : i32
    %c0_i32_0 = arith.constant 0 : i32
    return %arg0, %c0_i32 : i32, i32
  }
  func.func @transform_1(%arg0: i32) -> (i32, i32) {
    %c0_i32 = arith.constant 0 : i32
    %c0_i32_0 = arith.constant 0 : i32
    return %arg0, %c0_i32 : i32, i32
  }
  func.func @transform_2(%arg0: i32) -> (i32, i32) {
    %c0_i32 = arith.constant 0 : i32
    %c0_i32_0 = arith.constant 0 : i32
    return %arg0, %c0_i32 : i32, i32
  }
}

</mosaic_0001>

<llo_original>
// kernel: tpu_custom_call.1
$region0: #{tpu_custom_call.1}
  #allocation0 [shape = 'u32[]', space=smem, size = 0x4, offset = 0x4, fixed_abs, tag = 'smem constant byte address 0x4 - core index']
  #allocation1 [shape = 'u32[144,128]{1,0:T(1,128)}', space=vmem, size = 0x12000, scoped, tag = 'internal scratch']
  %s0 = inlined_call_operand.vmem [shape: f32[64,10], index: 0, kind: input, shape index: {}]
  %s1 = inlined_call_operand.vmem [shape: f32[64,2], index: 1, kind: input, shape index: {}]
  %s2 = inlined_call_operand.vmem [shape: f32[64,1], index: 2, kind: output, shape index: {}]
  %s3 = sld [smem:[#allocation0]]
  $region41: #{tpu_custom_call.1} parent=0
    _
  %s5 = ssub.s32 1, %s3
  %s6 = scalar_select 0, %s5, %s3
  loop: start=0, step=1, limit=6
  $region2: #{tpu_custom_call.1} parent=0 // loop_pre_header
    _
  $region3: #{tpu_custom_call.1} parent=0 // loop_header
    %s8 = sphi 0, %s12
    %p9 = scmp.ge.s32.totalorder %s8, 6
    %s18 = sphi 0, %s20
    %s21 = sphi 0, %s18
    %s22 = sphi 0, %s21
    %s38 = sphi 0, %s22
    %s44 = sphi 0, %s46
    %s47 = sphi 0, %s44
    %s48 = sphi 0, %s47
    %s64 = sphi 0, %s48
    %s70 = sphi 0, %s72
    %s73 = sphi 0, %s70
    %s74 = sphi 0, %s73
    %s90 = sphi 0, %s74
  $region4: #{tpu_custom_call.1} parent=0 // loop_header_branch
    %11 = sbr.rel (%p9) target = $region8
  $region5: #{tpu_custom_call.1} parent=0 // loop_body
    %s13 = ssub.s32 %s8, 1
    %s14 = ssub.s32 %s8, 2
    %s15 = sadd.s32 %s8, 1
    %s16 = ssub.s32 %s8, %s15
    %p17 = scmp.eq.s32.totalorder %s16, 0
    %s19 = sadd.s32 %s18, 1
    %s20 = scalar_select %p17, %s18, %s19
    %p23 = pneg %p17
    %p24 = scmp.eq.s32.totalorder %s8, 3
    %p25 = por %p23, %p24
    %p26 = scmp.ne.s32.totalorder %s18, %s21
    %p27 = scmp.eq.s32.totalorder %s8, 0
    %p28 = por %p26, %p27
    %p29 = scmp.ne.s32.totalorder %s18, %s21
    %p30 = scmp.eq.s32.totalorder %s13, 3
    %p31 = por %p29, %p30
    %p32 = scmp.ne.s32.totalorder %s21, %s22
    %p33 = scmp.eq.s32.totalorder %s13, 0
    %p34 = por %p32, %p33
    %p35 = scmp.ne.s32.totalorder %s21, %s22
    %p36 = scmp.eq.s32.totalorder %s14, 3
    %p37 = por %p35, %p36
    %p39 = scmp.ne.s32.totalorder %s22, %s38
    %p40 = scmp.eq.s32.totalorder %s14, 0
    %p41 = por %p39, %p40
    %s42 = ssub.s32 %s8, %s15
    %p43 = scmp.eq.s32.totalorder %s42, 0
    %s45 = sadd.s32 %s44, 1
    %s46 = scalar_select %p43, %s44, %s45
    %p49 = pneg %p43
    %p50 = scmp.eq.s32.totalorder %s8, 3
    %p51 = por %p49, %p50
    %p52 = scmp.ne.s32.totalorder %s44, %s47
    %p53 = scmp.eq.s32.totalorder %s8, 0
    %p54 = por %p52, %p53
    %p55 = scmp.ne.s32.totalorder %s44, %s47
    %p56 = scmp.eq.s32.totalorder %s13, 3
    %p57 = por %p55, %p56
    %p58 = scmp.ne.s32.totalorder %s47, %s48
    %p59 = scmp.eq.s32.totalorder %s13, 0
    %p60 = por %p58, %p59
    %p61 = scmp.ne.s32.totalorder %s47, %s48
    %p62 = scmp.eq.s32.totalorder %s14, 3
    %p63 = por %p61, %p62
    %p65 = scmp.ne.s32.totalorder %s48, %s64
    %p66 = scmp.eq.s32.totalorder %s14, 0
    %p67 = por %p65, %p66
    %s68 = ssub.s32 %s8, %s15
    %p69 = scmp.eq.s32.totalorder %s68, 0
    %s71 = sadd.s32 %s70, 1
    %s72 = scalar_select %p69, %s70, %s71
    %p75 = pneg %p69
    %p76 = scmp.eq.s32.totalorder %s8, 3
    %p77 = por %p75, %p76
    %p78 = scmp.ne.s32.totalorder %s70, %s73
    %p79 = scmp.eq.s32.totalorder %s8, 0
    %p80 = por %p78, %p79
    %p81 = scmp.ne.s32.totalorder %s70, %s73
    %p82 = scmp.eq.s32.totalorder %s13, 3
    %p83 = por %p81, %p82
    %p84 = scmp.ne.s32.totalorder %s73, %s74
    %p85 = scmp.eq.s32.totalorder %s13, 0
    %p86 = por %p84, %p85
    %p87 = scmp.ne.s32.totalorder %s73, %s74
    %p88 = scmp.eq.s32.totalorder %s14, 3
    %p89 = por %p87, %p88
    %p91 = scmp.ne.s32.totalorder %s74, %s90
    %p92 = scmp.eq.s32.totalorder %s14, 0
    %p93 = por %p91, %p92
    %p94 = scmp.le.s32.totalorder 1, %s8
    %p95 = scmp.lt.s32.totalorder %s8, 5
    %p96 = pnand %p94, %p95
    %p97 = pneg %p96
    // Predicated region
    $region9: #{tpu_custom_call.1} parent=5 // pred_check
      _
    $region10: #{tpu_custom_call.1} parent=5 // pred_check_branch
      %99 = sbr.rel (%p96) target = $region12
    $region11: #{tpu_custom_call.1} parent=5 // pred_region
      %s100 = ssub.s32 %s8, 1
    $region12: #{tpu_custom_call.1} parent=5 // pred_fallthru
      _
    %p101 = scmp.lt.s32.totalorder %s8, 4
    // Predicated region
    $region13: #{tpu_custom_call.1} parent=5 // pred_check
      %p102 = pneg %p101
    $region14: #{tpu_custom_call.1} parent=5 // pred_check_branch
      %104 = sbr.rel (%p102) target = $region16
    $region15: #{tpu_custom_call.1} parent=5 // pred_region
      // Predicated region
      $region17: #{tpu_custom_call.1} parent=15 // pred_check
        %p105 = pneg %p28
      $region18: #{tpu_custom_call.1} parent=15 // pred_check_branch
        %107 = sbr.rel (%p105) target = $region20
      $region19: #{tpu_custom_call.1} parent=15 // pred_region
        %s108 = smul.u32 2, %s8
        %p109 = scmp.lt.s32.totalorder %s108, 7
        %s110 = scalar_select %p109, %s108, 7
        %s111 = smul.addr %s110, 8
        %s112 = scalar_lea.vmem %s0, %s111
        %s113 = smul.u32 2, %s8
      $region20: #{tpu_custom_call.1} parent=15 // pred_fallthru
        _
      // Predicated region
      $region21: #{tpu_custom_call.1} parent=15 // pred_check
        %p114 = pneg %p54
      $region22: #{tpu_custom_call.1} parent=15 // pred_check_branch
        %116 = sbr.rel (%p114) target = $region24
      $region23: #{tpu_custom_call.1} parent=15 // pred_region
        %s117 = smul.u32 2, %s8
        %p118 = scmp.lt.s32.totalorder %s117, 7
        %s119 = scalar_select %p118, %s117, 7
        %s120 = smul.addr %s119, 8
        %s121 = scalar_lea.vmem %s1, %s120
        %s122 = smul.u32 2, %s8
      $region24: #{tpu_custom_call.1} parent=15 // pred_fallthru
        _
    $region16: #{tpu_custom_call.1} parent=5 // pred_fallthru
      _
    %p123 = scmp.le.s32.totalorder 1, %s8
    %p124 = scmp.lt.s32.totalorder %s8, 5
    %p125 = pnand %p123, %p124
    %p126 = pneg %p125
    // Predicated region
    $region25: #{tpu_custom_call.1} parent=5 // pred_check
      _
    $region26: #{tpu_custom_call.1} parent=5 // pred_check_branch
      %128 = sbr.rel (%p125) target = $region28
    $region27: #{tpu_custom_call.1} parent=5 // pred_region
      %s129 = ssub.s32 %s8, 1
      %s130 = smul.u32 2, %s13
      %p131 = scmp.lt.s32.totalorder %s130, 7
      %s132 = scalar_select %p131, %s130, 7
      %s133 = smul.addr %s132, 8
      %s134 = scalar_lea.vmem %s0, %s133
      %p135 = pneg %p34
      %p136 = pneg %p31
      %s137 = smul.u32 2, %s13
      %p138 = scmp.lt.s32.totalorder %s137, 7
      %s139 = scalar_select %p138, %s137, 7
      %s140 = smul.addr %s139, 8
      %s141 = scalar_lea.vmem %s1, %s140
      %p142 = pneg %p60
      %p143 = pneg %p57
      %p144 = pneg %p86
      %p145 = pneg %p83
      %s146 = smul.u32 2, %s13
      %p147 = scmp.lt.s32.totalorder %s146, 7
      %s148 = scalar_select %p147, %s146, 7
      %s149 = smul.addr %s148, 8
      %s150 = scalar_lea.vmem %s2, %s149
      %s151 = smul.u32 2, %s13
      %p152 = scmp.lt.s32.totalorder %s151, 7
      %s153 = scalar_select %p152, %s151, 7
      %s154 = smul.addr %s153, 8
      %s155 = scalar_lea.vmem %s0, %s154
      %s156 = smul.u32 2, %s13
      %s157 = smul.u32 2, %s13
      %p158 = scmp.lt.s32.totalorder %s157, 7
      %s159 = scalar_select %p158, %s157, 7
      %s160 = smul.addr %s159, 8
      %s161 = scalar_lea.vmem %s1, %s160
      %s162 = smul.u32 2, %s13
      %s163 = smul.u32 2, %s13
      %p164 = scmp.lt.s32.totalorder %s163, 7
      %s165 = scalar_select %p164, %s163, 7
      %s166 = smul.addr %s165, 8
      %s167 = scalar_lea.vmem %s2, %s166
      %s168 = smul.u32 2, %s13
      %v169 = vld [vmem:[%s155] sm:$0xff]
      %v170 = vld [vmem:[%s155 + $0x8] sm:$0xff]
      %v171 = vld [vmem:[%s161] sm:$0xff]
      %v172 = vld [vmem:[%s161 + $0x8] sm:$0xff]
      %v173 = vcvt.f32.s32.to.zero.pseudo %v171
      %v174 = vcvt.f32.s32.to.zero.pseudo %v172
      %v175 = vlaneseq
      %v176 = vand.u32 %v175, 127
      %vm177 = vcmask 80896
      %v178 = vsel %vm177, %v169, -inf
      %179 = vmax.xlane.f32.xlu0 %v178
      %v180 = vpop.xlane.xlu0 %179
      %v181 = vsel %vm177, %v170, -inf
      %182 = vmax.xlane.f32.xlu0 %v181
      %v183 = vpop.xlane.xlu0 %182
      %v184 = vsub.f32 %v169, %v180
      %v185 = vsub.f32 %v170, %v183
      %v186 = vmul.f32 %v184, 1.442695
      %v187 = vpow.pop %v186
      %v188 = vmul.f32 %v185, 1.442695
      %v189 = vpow.pop %v188
      %v190 = vsel %vm177, %v187, 0.0
      %191 = vadd.xlane.f32.xlu0 %v190
      %v192 = vpop.xlane.xlu0 %191
      %v193 = vsel %vm177, %v189, 0.0
      %194 = vadd.xlane.f32.xlu0 %v193
      %v195 = vpop.xlane.xlu0 %194
      %v196 = vlog2.pop %v192
      %v197 = vmul.f32 %v196, 0.6931472
      %v198 = vlog2.pop %v195
      %v199 = vmul.f32 %v198, 0.6931472
      %v200 = vadd.f32 %v180, %v197
      %v201 = vadd.f32 %v183, %v199
      %202 = vset.pattern.permute.xlu0 0
      %203 = vperm.xlu0 %202, %v173
      %v204 = vpop.permute.xlu0 %203
      %205 = vset.pattern.permute.xlu0 0
      %206 = vperm.xlu0 %205, %v174
      %v207 = vpop.permute.xlu0 %206
      %vm208 = vcmp.eq.s32.totalorder %v176, %v204
      %vm209 = vcmp.eq.s32.totalorder %v176, %v207
      %v210 = vsel %vm208, %v169, 0.0
      %v211 = vsel %vm209, %v170, 0.0
      %v212 = vsel %vm177, %v210, 0.0
      %213 = vadd.xlane.f32.xlu0 %v212
      %v214 = vpop.xlane.xlu0 %213
      %v215 = vsel %vm177, %v211, 0.0
      %216 = vadd.xlane.f32.xlu0 %v215
      %v217 = vpop.xlane.xlu0 %216
      %v218 = vsub.f32 %v200, %v214
      %v219 = vsub.f32 %v201, %v217
      %v220 = vmax.f32 %v218, 0.0
      %v221 = vmax.f32 %v219, 0.0
      %v222 = vsub.f32 0.0, %v220
      %v223 = vsub.f32 0.0, %v221
      %v224 = vmul.f32 %v222, 1.442695
      %v225 = vpow.pop %v224
      %v226 = vmul.f32 %v223, 1.442695
      %v227 = vpow.pop %v226
      %v228 = vsub.f32 1.0, %v225
      %v229 = vsub.f32 1.0, %v227
      %v230 = vmul.f32 %v228, %v228
      %v231 = vmul.f32 %v229, %v229
      %v232 = vmul.f32 %v230, %v220
      %v233 = vmul.f32 %v231, %v221
      %v234 = vmul.f32 %v232, %v171
      %v235 = vmul.f32 %v233, %v172
      %238 = vrot.lane.b32.xlu0 %v234, 127
      %v239 = vpop.permute.xlu0 %238
      %240 = vrot.lane.b32.xlu0 %v235, 127
      %v241 = vpop.permute.xlu0 %240
      %vm244 = vcmask 7168
      %245 = vst.msk [vmem:[%s167] sm:$0xff] %vm244, %v239
      %246 = vst.msk [vmem:[%s167 + $0x8] sm:$0xff] %vm244, %v241
      %s247 = smul.u32 2, %s13
      %p248 = scmp.lt.s32.totalorder %s247, 7
      %s249 = scalar_select %p248, %s247, 7
      %s250 = smul.addr %s249, 8
      %s251 = scalar_lea.vmem %s2, %s250
      // Predicated region
      $region29: #{tpu_custom_call.1} parent=27 // pred_check
        %p252 = pneg %p83
      $region30: #{tpu_custom_call.1} parent=27 // pred_check_branch
        %254 = sbr.rel (%p252) target = $region32
      $region31: #{tpu_custom_call.1} parent=27 // pred_region
        %s255 = smul.u32 2, %s13
      $region32: #{tpu_custom_call.1} parent=27 // pred_fallthru
        _
    $region28: #{tpu_custom_call.1} parent=5 // pred_fallthru
      _
    %p256 = scmp.le.s32.totalorder 2, %s8
    // Predicated region
    $region33: #{tpu_custom_call.1} parent=5 // pred_check
      %p257 = pneg %p256
    $region34: #{tpu_custom_call.1} parent=5 // pred_check_branch
      %259 = sbr.rel (%p257) target = $region36
    $region35: #{tpu_custom_call.1} parent=5 // pred_region
      %s260 = ssub.s32 %s8, 2
      // Predicated region
      $region37: #{tpu_custom_call.1} parent=35 // pred_check
        %p261 = pneg %p89
      $region38: #{tpu_custom_call.1} parent=35 // pred_check_branch
        %263 = sbr.rel (%p261) target = $region40
      $region39: #{tpu_custom_call.1} parent=35 // pred_region
        %s264 = smul.u32 2, %s14
        %p265 = scmp.lt.s32.totalorder %s264, 7
        %s266 = scalar_select %p265, %s264, 7
        %s267 = smul.addr %s266, 8
        %s268 = scalar_lea.vmem %s2, %s267
      $region40: #{tpu_custom_call.1} parent=35 // pred_fallthru
        _
    $region36: #{tpu_custom_call.1} parent=5 // pred_fallthru
      _
  $region6: #{tpu_custom_call.1} parent=0 // loop_footer
    %s12 = sadd.s32 1, %s8
  $region7: #{tpu_custom_call.1} parent=0 // loop_footer_branch
    %7 = sbr.rel target = $region3
  $region8: #{tpu_custom_call.1} parent=0 // loop_exit
    _

</llo_original>
